<compile_context>
chip_gen: v7x
topology: tpu7x:2x2x1
jax: 0.10.0
libtpu: 0.0.40
codegen_flags: <defaults>
</compile_context>

<pallas_src>
import functools

import jax
import jax.numpy as jnp
from jax.experimental import pallas as pl
from jax.experimental.pallas import tpu as pltpu


# ----------------------------------------------------------------------------
# Kernel: one grid step == one block of `block_b` batch elements (M = block_b*L rows).
# ----------------------------------------------------------------------------
def _dsa_kernel(x_ref, w_ref, b_ref, o_ref, *,
                block_b, seq_len, num_heads, head_dim, att_dim):
    A, L, H, hd = att_dim, seq_len, num_heads, head_dim

    # Fused projection: (M, 3E) @ (3E, 4A) -> [Q | Res | K | V], f32 accumulate.
    proj = (jnp.dot(x_ref[...], w_ref[...], preferred_element_type=jnp.float32)
            + b_ref[...])                                        # (M, 4A) f32

    # One-time lane split of the fused projection (once per grid step).
    q3 = proj[:, 0 * A:1 * A].reshape(block_b, L, A)
    r3 = proj[:, 1 * A:2 * A].reshape(block_b, L, A)
    k3 = proj[:, 2 * A:3 * A].reshape(block_b, L, A)
    v3 = proj[:, 3 * A:4 * A].reshape(block_b, L, A)

    # Center Q and K over the sequence (per batch element, per feature == per
    # head per feature, identical to the torch per-head centering).
    qc = q3 - jnp.mean(q3, axis=1, keepdims=True)
    kc = k3 - jnp.mean(k3, axis=1, keepdims=True)

    # Hoisted bf16 casts (single VPU pass each, reused by every head).
    qc_b = qc.astype(jnp.bfloat16)
    kc_b = kc.astype(jnp.bfloat16)
    v_b = v3.astype(jnp.bfloat16)

    head_outs = []
    for h in range(H):                       # static, small head count
        cs = slice(h * hd, (h + 1) * hd)
        # scores = Qc @ Kc^T, batched over the block's batch elements
        # (use_scale=False in the reference config).
        s = jnp.einsum('bld,bmd->blm', qc_b[..., cs], kc_b[..., cs],
                       preferred_element_type=jnp.float32)       # (bb, L, L) f32
        m = jnp.max(s, axis=-1, keepdims=True)
        e = jnp.exp(s - m)
        den = jnp.sum(e, axis=-1, keepdims=True)
        # pairwise softmax + unary term (softmax over a size-1 dim == 1.0 exactly).
        p = e * pl.reciprocal(den, approx=True) + 1.0
        # TODO(synk): nn.Dropout(att_dropout) is identity in eval mode.
        head_outs.append(
            jnp.einsum('blm,bmd->bld', p.astype(jnp.bfloat16), v_b[..., cs],
                       preferred_element_type=jnp.float32))      # (bb, L, hd) f32
    # TODO(synk): flash-style key tiling (online softmax over L blocks) is needed
    # before running large L on v7x's 64 MiB VMEM; trivial at these shapes.

    out = jnp.concatenate(head_outs, axis=-1)                    # (bb, L, A)
    out = jnp.maximum(out + r3, 0.0)            # residual (align_to='output') + relu
    # Single lane-dense full-width store per grid step.
    o_ref[...] = out.reshape(block_b * L, A).astype(o_ref.dtype)


# ----------------------------------------------------------------------------
# Wrapper helpers
# ----------------------------------------------------------------------------
def _vmem_limit_bytes():
    """Generation-aware VMEM limit: ~half of physical, clamped to [32, 96] MiB."""
    try:
        cap = int(pltpu.get_tpu_info().vmem_capacity_bytes)
    except Exception:
        cap = 64 * 1024 * 1024          # conservative (v7x-sized) fallback
    return int(min(max(cap // 2, 32 * 1024 * 1024), 96 * 1024 * 1024))


def _pick_block_b(batch, seq_len, emb_dim, att_dim, vmem_budget):
    """Largest divisor of `batch` whose (block_b*seq_len)-row slab fits the VMEM
    budget (double-buffered bf16 input, f32 output, f32 working slabs)."""
    per_row = (3 * emb_dim * 2 * 2        # (M, 3E) bf16 input, double-buffered
               + att_dim * 4 * 2          # (M, A) f32 output, double-buffered
               + 4 * att_dim * 4 * 3      # fused proj / centered / residual f32 slabs
               + seq_len * 4)             # one head's (L, L) f32 scores
    max_rows = max(seq_len, (vmem_budget // 2) // max(per_row, 1))
    best = 1
    for d in range(1, batch + 1):
        if batch % d:
            continue
        rows = d * seq_len
        if rows > max_rows:
            continue
        if rows % 8 and d != batch:
            continue
        best = d
    # TODO(synk): on v7x (2 TensorCores) prefer an even number of grid steps so
    # the "parallel" axis shards evenly; on v5e/v6e (1 TC) one step is optimal.
    return best


# ----------------------------------------------------------------------------
# Public wrapper
# ----------------------------------------------------------------------------
def disentangled_self_attention(query, key, value, params, *, num_heads):
    B, L, E = query.shape
    A = params["wq"].shape[1]
    assert A % num_heads == 0
    hd = A // num_heads

    # Host-side weight prep (free): block-diagonal fused weight so the kernel does
    # ONE (M,3E)x(3E,4A) matmul (N = 4A, lane-dense) for all four projections.
    # W_key2/b_key2 dropped: the unary softmax over a size-1 dim is exactly 1.0.
    zeros = jnp.zeros((E, A), jnp.float32)
    w_all = jnp.concatenate([
        jnp.concatenate([params["wq"], params["wres"], zeros, zeros], axis=1),
        jnp.concatenate([zeros, zeros, params["wk"], zeros], axis=1),
        jnp.concatenate([zeros, zeros, zeros, params["wv"]], axis=1),
    ], axis=0).astype(jnp.bfloat16)                                 # (3E, 4A)
    b_all = jnp.concatenate([params["bq"], params["bres"],
                             params["bk"], params["bv"]], axis=1)   # (1, 4A) f32

    vmem_limit = _vmem_limit_bytes()
    block_b = _pick_block_b(B, L, E, A, vmem_limit)
    M = block_b * L
    n_blocks = B // block_b

    # bf16 activations, concatenated into one (B*L, 3E) slab (single input DMA;
    # in a fused pipeline the producer would emit this directly in bf16).
    x = jnp.concatenate([query.reshape(B * L, E),
                         key.reshape(B * L, E),
                         value.reshape(B * L, E)], axis=-1).astype(jnp.bfloat16)

    kernel = functools.partial(_dsa_kernel, block_b=block_b, seq_len=L,
                               num_heads=num_heads, head_dim=hd, att_dim=A)

    rows = lambda i: (i, 0)
    whole = lambda i: (0, 0)

    # TODO(synk): pipeline_mode=pl.Buffered(1) on the grid-invariant weight/bias
    # specs would drop their second pipeline buffer (small VMEM win).
    grid_spec = pltpu.PrefetchScalarGridSpec(
        num_scalar_prefetch=0,
        grid=(n_blocks,),
        in_specs=[
            pl.BlockSpec((M, 3 * E), rows),       # [query | key | value] rows, bf16
            pl.BlockSpec((3 * E, 4 * A), whole),  # block-diag [Wq|Wres|Wk|Wv], bf16
            pl.BlockSpec((1, 4 * A), whole),      # [bq|bres|bk|bv], f32
        ],
        out_specs=pl.BlockSpec((M, A), rows),
    )

    out2 = pl.pallas_call(
        kernel,
        out_shape=jax.ShapeDtypeStruct((B * L, A), jnp.float32),
        grid_spec=grid_spec,
        compiler_params=pltpu.CompilerParams(
            dimension_semantics=("parallel",),
            vmem_limit_bytes=vmem_limit,
        ),
    )(x, w_all, b_all)

    return out2.reshape(B, L, A)


# ----------------------------------------------------------------------------
# Pure-JAX reference replicating the PyTorch forward exactly (for verification).
# ----------------------------------------------------------------------------
def reference_forward(query, key, value, params, num_heads):
    B, L, E = query.shape
    A = params["wq"].shape[1]
    hd = A // num_heads

    lin = lambda x, w, b: x @ w + b
    queries = lin(query, params["wq"], params["bq"])
    keys = lin(key, params["wk"], params["bk"])
    values = lin(value, params["wv"], params["bv"])
    keys2 = lin(key, params["wk2"], params["bk2"])

    # torch: split(dim=2) then cat(dim=0) -> (H*B, L, hd), head-major on axis 0
    def to_heads(x):
        return x.reshape(B, L, num_heads, hd).transpose(2, 0, 1, 3).reshape(num_heads * B, L, hd)

    Q_ = to_heads(queries)
    K_ = to_heads(keys)
    V_ = to_heads(values)
    K2_ = to_heads(keys2)

    mu_Q = Q_.mean(axis=1, keepdims=True)
    mu_K = K_.mean(axis=1, keepdims=True)
    mu_K2 = K2_.mean(axis=1, keepdims=True)
    Qc = Q_ - mu_Q
    Kc = K_ - mu_K

    pairwise = jax.nn.softmax(Qc @ Kc.transpose(0, 2, 1), axis=2)
    unary = jax.nn.softmax(mu_K2 @ Kc.transpose(0, 2, 1), axis=1)   # size-1 dim -> 1.0
    out = (pairwise + unary) @ V_                                   # (H*B, L, hd)

    # torch: split(batch_size, dim=0) then cat(dim=2)
    out = out.reshape(num_heads, B, L, hd).transpose(1, 2, 0, 3).reshape(B, L, A)

    residual = lin(query, params["wres"], params["bres"])           # align_to='output'
    out = out + residual                                            # use_residual
    return jax.nn.relu(out)


def init_params(key, embedding_dim, attention_dim):
    ks = jax.random.split(key, 10)
    scale = 0.05

    def w(k):
        return (scale * jax.random.normal(k, (embedding_dim, attention_dim))).astype(jnp.float32)

    def b(k):
        return (scale * jax.random.normal(k, (1, attention_dim))).astype(jnp.float32)

    # W_key2/b_key2 kept for the reference only; the Pallas kernel drops them.
    # W_unary exists in __init__ but is never used in forward -> not instantiated.
    return {
        "wq": w(ks[0]), "bq": b(ks[1]),
        "wk": w(ks[2]), "bk": b(ks[3]),
        "wv": w(ks[4]), "bv": b(ks[5]),
        "wk2": w(ks[6]), "bk2": b(ks[7]),
        "wres": w(ks[8]), "bres": b(ks[9]),
    }


if __name__ == "__main__":
    B, L, E = 4, 8, 32          # batch, seq, embedding_dim
    A, H = 64, 2                # attention_dim, num_heads  (head_dim = 32)

    root = jax.random.PRNGKey(0)
    kq, kk, kv, kp = jax.random.split(root, 4)
    query = jax.random.normal(kq, (B, L, E), jnp.float32)
    key_in = jax.random.normal(kk, (B, L, E), jnp.float32)
    value = jax.random.normal(kv, (B, L, E), jnp.float32)
    params = init_params(kp, E, A)

    out = disentangled_self_attention(query, key_in, value, params, num_heads=H)
    out = jax.block_until_ready(out)

    ref = reference_forward(query, key_in, value, params, H)
    assert out.shape == (B, L, A)
    # bf16 activations/weights on the MXU (f32 accumulate) -> loosened tolerance.
    assert jnp.allclose(out, ref, atol=2e-2, rtol=2e-2), "kernel / reference mismatch"

    print("KERNEL_OK")
</pallas_src>

<mosaic_0001>
module attributes {stable_mosaic.version = 11 : i64} {
  func.func @_dsa_kernel(%arg0: i32, %arg1: memref<32x96xbf16, #tpu.memory_space<vmem>>, %arg2: memref<96x256xbf16, #tpu.memory_space<vmem>>, %arg3: memref<1x256xf32, #tpu.memory_space<vmem>>, %arg4: memref<32x64xf32, #tpu.memory_space<vmem>>) attributes {dimension_semantics = [#tpu.dimension_semantics<parallel>], iteration_bounds = array<i64: 1>, scalar_prefetch = 0 : i64, scratch_operands = 0 : i64, tpu.core_type = #tpu.core_type<tc>, window_params = [{transform_indices = @transform_0, window_bounds = array<i64: 32, 96>}, {pipeline_mode = #tpu.pipeline_mode<synchronous>, transform_indices = @transform_1, window_bounds = array<i64: 96, 256>}, {pipeline_mode = #tpu.pipeline_mode<synchronous>, transform_indices = @transform_2, window_bounds = array<i64: 1, 256>}, {transform_indices = @transform_3, window_bounds = array<i64: 32, 64>}]} {
    %c0 = arith.constant 0 : index
    %c0_0 = arith.constant 0 : index
    %0 = vector.load %arg1[%c0, %c0_0] : memref<32x96xbf16, #tpu.memory_space<vmem>>, vector<32x96xbf16>
    %c0_1 = arith.constant 0 : index
    %c0_2 = arith.constant 0 : index
    %1 = vector.load %arg2[%c0_1, %c0_2] : memref<96x256xbf16, #tpu.memory_space<vmem>>, vector<96x256xbf16>
    %cst = arith.constant dense<0.000000e+00> : vector<32x256xf32>
    %2 = tpu.matmul %0, %1, %cst {dimension_numbers = #tpu.dot_dimension_numbers<[1], [0], [0], [1], [0, 0, 1, 1], [], []>} : vector<32x96xbf16>, vector<96x256xbf16>, vector<32x256xf32> -> vector<32x256xf32>
    %c0_3 = arith.constant 0 : index
    %c0_4 = arith.constant 0 : index
    %3 = vector.load %arg3[%c0_3, %c0_4] : memref<1x256xf32, #tpu.memory_space<vmem>>, vector<1x256xf32>
    %4 = vector.broadcast %3 : vector<1x256xf32> to vector<32x256xf32>
    %5 = arith.addf %2, %4 : vector<32x256xf32>
    %6 = vector.extract_strided_slice %5 {offsets = [0, 0], sizes = [32, 64], strides = [1, 1]} : vector<32x256xf32> to vector<32x64xf32>
    %7 = vector.shape_cast %6 : vector<32x64xf32> to vector<4x8x64xf32>
    %8 = vector.extract_strided_slice %5 {offsets = [0, 64], sizes = [32, 64], strides = [1, 1]} : vector<32x256xf32> to vector<32x64xf32>
    %9 = vector.shape_cast %8 : vector<32x64xf32> to vector<4x8x64xf32>
    %10 = vector.extract_strided_slice %5 {offsets = [0, 128], sizes = [32, 64], strides = [1, 1]} : vector<32x256xf32> to vector<32x64xf32>
    %11 = vector.shape_cast %10 : vector<32x64xf32> to vector<4x8x64xf32>
    %12 = vector.extract_strided_slice %5 {offsets = [0, 192], sizes = [32, 64], strides = [1, 1]} : vector<32x256xf32> to vector<32x64xf32>
    %13 = vector.shape_cast %12 : vector<32x64xf32> to vector<4x8x64xf32>
    %cst_5 = arith.constant dense<0.000000e+00> : vector<4x64xf32>
    %14 = vector.multi_reduction <add>, %7, %cst_5 [1] : vector<4x8x64xf32> to vector<4x64xf32>
    %15 = vector.shape_cast %14 : vector<4x64xf32> to vector<4x1x64xf32>
    %cst_6 = arith.constant 8.000000e+00 : f32
    %16 = vector.broadcast %cst_6 : f32 to vector<4x1x64xf32>
    %17 = arith.divf %15, %16 : vector<4x1x64xf32>
    %18 = vector.broadcast %17 : vector<4x1x64xf32> to vector<4x8x64xf32>
    %19 = arith.subf %7, %18 : vector<4x8x64xf32>
    %cst_7 = arith.constant dense<0.000000e+00> : vector<4x64xf32>
    %20 = vector.multi_reduction <add>, %11, %cst_7 [1] : vector<4x8x64xf32> to vector<4x64xf32>
    %21 = vector.shape_cast %20 : vector<4x64xf32> to vector<4x1x64xf32>
    %cst_8 = arith.constant 8.000000e+00 : f32
    %22 = vector.broadcast %cst_8 : f32 to vector<4x1x64xf32>
    %23 = arith.divf %21, %22 : vector<4x1x64xf32>
    %24 = vector.broadcast %23 : vector<4x1x64xf32> to vector<4x8x64xf32>
    %25 = arith.subf %11, %24 : vector<4x8x64xf32>
    %26 = arith.truncf %19 : vector<4x8x64xf32> to vector<4x8x64xbf16>
    %27 = arith.truncf %25 : vector<4x8x64xf32> to vector<4x8x64xbf16>
    %28 = arith.truncf %13 : vector<4x8x64xf32> to vector<4x8x64xbf16>
    %29 = vector.extract_strided_slice %26 {offsets = [0, 0, 0], sizes = [4, 8, 32], strides = [1, 1, 1]} : vector<4x8x64xbf16> to vector<4x8x32xbf16>
    %30 = vector.extract_strided_slice %27 {offsets = [0, 0, 0], sizes = [4, 8, 32], strides = [1, 1, 1]} : vector<4x8x64xbf16> to vector<4x8x32xbf16>
    "tpu.trace_start"() <{level = 10 : i32, message = "bld,bmd->blm"}> : () -> ()
    %cst_9 = arith.constant dense<0.000000e+00> : vector<4x8x8xf32>
    %31 = tpu.matmul %29, %30, %cst_9 {dimension_numbers = #tpu.dot_dimension_numbers<[2], [2], [1], [1], [0, 0, 0, 1, 1, 1], [0], [0]>} : vector<4x8x32xbf16>, vector<4x8x32xbf16>, vector<4x8x8xf32> -> vector<4x8x8xf32>
    "tpu.trace_stop"() : () -> ()
    %cst_10 = arith.constant dense<0xFF800000> : vector<4x8xf32>
    %32 = vector.multi_reduction <maximumf>, %31, %cst_10 [2] : vector<4x8x8xf32> to vector<4x8xf32>
    %33 = vector.shape_cast %32 : vector<4x8xf32> to vector<4x8x1xf32>
    %34 = vector.broadcast %33 : vector<4x8x1xf32> to vector<4x8x8xf32>
    %35 = arith.subf %31, %34 : vector<4x8x8xf32>
    %36 = math.exp %35 : vector<4x8x8xf32>
    %cst_11 = arith.constant dense<0.000000e+00> : vector<4x8xf32>
    %37 = vector.multi_reduction <add>, %36, %cst_11 [2] : vector<4x8x8xf32> to vector<4x8xf32>
    %38 = vector.shape_cast %37 : vector<4x8xf32> to vector<4x8x1xf32>
    %39 = tpu.reciprocal %38 {approx = true} : vector<4x8x1xf32> -> vector<4x8x1xf32>
    %40 = vector.broadcast %39 : vector<4x8x1xf32> to vector<4x8x8xf32>
    %41 = arith.mulf %36, %40 : vector<4x8x8xf32>
    %cst_12 = arith.constant 1.000000e+00 : f32
    %42 = vector.broadcast %cst_12 : f32 to vector<4x8x8xf32>
    %43 = arith.addf %41, %42 : vector<4x8x8xf32>
    %44 = arith.truncf %43 : vector<4x8x8xf32> to vector<4x8x8xbf16>
    %45 = vector.extract_strided_slice %28 {offsets = [0, 0, 0], sizes = [4, 8, 32], strides = [1, 1, 1]} : vector<4x8x64xbf16> to vector<4x8x32xbf16>
    "tpu.trace_start"() <{level = 10 : i32, message = "blm,bmd->bld"}> : () -> ()
    %cst_13 = arith.constant dense<0.000000e+00> : vector<4x8x32xf32>
    %46 = tpu.matmul %44, %45, %cst_13 {dimension_numbers = #tpu.dot_dimension_numbers<[2], [1], [1], [2], [0, 0, 0, 1, 1, 2], [0], [0]>} : vector<4x8x8xbf16>, vector<4x8x32xbf16>, vector<4x8x32xf32> -> vector<4x8x32xf32>
    "tpu.trace_stop"() : () -> ()
    %47 = vector.extract_strided_slice %26 {offsets = [0, 0, 32], sizes = [4, 8, 32], strides = [1, 1, 1]} : vector<4x8x64xbf16> to vector<4x8x32xbf16>
    %48 = vector.extract_strided_slice %27 {offsets = [0, 0, 32], sizes = [4, 8, 32], strides = [1, 1, 1]} : vector<4x8x64xbf16> to vector<4x8x32xbf16>
    "tpu.trace_start"() <{level = 10 : i32, message = "bld,bmd->blm"}> : () -> ()
    %cst_14 = arith.constant dense<0.000000e+00> : vector<4x8x8xf32>
    %49 = tpu.matmul %47, %48, %cst_14 {dimension_numbers = #tpu.dot_dimension_numbers<[2], [2], [1], [1], [0, 0, 0, 1, 1, 1], [0], [0]>} : vector<4x8x32xbf16>, vector<4x8x32xbf16>, vector<4x8x8xf32> -> vector<4x8x8xf32>
    "tpu.trace_stop"() : () -> ()
    %cst_15 = arith.constant dense<0xFF800000> : vector<4x8xf32>
    %50 = vector.multi_reduction <maximumf>, %49, %cst_15 [2] : vector<4x8x8xf32> to vector<4x8xf32>
    %51 = vector.shape_cast %50 : vector<4x8xf32> to vector<4x8x1xf32>
    %52 = vector.broadcast %51 : vector<4x8x1xf32> to vector<4x8x8xf32>
    %53 = arith.subf %49, %52 : vector<4x8x8xf32>
    %54 = math.exp %53 : vector<4x8x8xf32>
    %cst_16 = arith.constant dense<0.000000e+00> : vector<4x8xf32>
    %55 = vector.multi_reduction <add>, %54, %cst_16 [2] : vector<4x8x8xf32> to vector<4x8xf32>
    %56 = vector.shape_cast %55 : vector<4x8xf32> to vector<4x8x1xf32>
    %57 = tpu.reciprocal %56 {approx = true} : vector<4x8x1xf32> -> vector<4x8x1xf32>
    %58 = vector.broadcast %57 : vector<4x8x1xf32> to vector<4x8x8xf32>
    %59 = arith.mulf %54, %58 : vector<4x8x8xf32>
    %cst_17 = arith.constant 1.000000e+00 : f32
    %60 = vector.broadcast %cst_17 : f32 to vector<4x8x8xf32>
    %61 = arith.addf %59, %60 : vector<4x8x8xf32>
    %62 = arith.truncf %61 : vector<4x8x8xf32> to vector<4x8x8xbf16>
    %63 = vector.extract_strided_slice %28 {offsets = [0, 0, 32], sizes = [4, 8, 32], strides = [1, 1, 1]} : vector<4x8x64xbf16> to vector<4x8x32xbf16>
    "tpu.trace_start"() <{level = 10 : i32, message = "blm,bmd->bld"}> : () -> ()
    %cst_18 = arith.constant dense<0.000000e+00> : vector<4x8x32xf32>
    %64 = tpu.matmul %62, %63, %cst_18 {dimension_numbers = #tpu.dot_dimension_numbers<[2], [1], [1], [2], [0, 0, 0, 1, 1, 2], [0], [0]>} : vector<4x8x8xbf16>, vector<4x8x32xbf16>, vector<4x8x32xf32> -> vector<4x8x32xf32>
    "tpu.trace_stop"() : () -> ()
    %65 = tpu.concatenate %46, %64 in 2 : vector<4x8x32xf32>, vector<4x8x32xf32> -> vector<4x8x64xf32>
    %66 = arith.addf %65, %9 : vector<4x8x64xf32>
    %cst_19 = arith.constant 0.000000e+00 : f32
    %67 = vector.broadcast %cst_19 : f32 to vector<4x8x64xf32>
    %68 = arith.maximumf %66, %67 : vector<4x8x64xf32>
    %69 = vector.shape_cast %68 : vector<4x8x64xf32> to vector<32x64xf32>
    %c0_20 = arith.constant 0 : index
    %c0_21 = arith.constant 0 : index
    %70 = vector.load %arg4[%c0_20, %c0_21] : memref<32x64xf32, #tpu.memory_space<vmem>>, vector<32x64xf32>
    tpu.vector_store %arg4[%c0_20, %c0_21], %69 {strides = array<i32>} : memref<32x64xf32, #tpu.memory_space<vmem>>, vector<32x64xf32>,
    return
  }
  func.func @transform_0(%arg0: i32) -> (i32, i32) {
    %c0_i32 = arith.constant 0 : i32
    %c0_i32_0 = arith.constant 0 : i32
    return %arg0, %c0_i32 : i32, i32
  }
  func.func @transform_1(%arg0: i32) -> (i32, i32) {
    %c0_i32 = arith.constant 0 : i32
    %c0_i32_0 = arith.constant 0 : i32
    %c0_i32_1 = arith.constant 0 : i32
    return %c0_i32, %c0_i32_0 : i32, i32
  }
  func.func @transform_2(%arg0: i32) -> (i32, i32) {
    %c0_i32 = arith.constant 0 : i32
    %c0_i32_0 = arith.constant 0 : i32
    %c0_i32_1 = arith.constant 0 : i32
    return %c0_i32, %c0_i32_0 : i32, i32
  }
  func.func @transform_3(%arg0: i32) -> (i32, i32) {
    %c0_i32 = arith.constant 0 : i32
    %c0_i32_0 = arith.constant 0 : i32
    return %arg0, %c0_i32 : i32, i32
  }
}

</mosaic_0001>

<llo_original>
// kernel: tpu_custom_call.1
$region0: #{tpu_custom_call.1}
  #allocation0 [shape = 'u32[]', space=smem, size = 0x4, offset = 0x4, fixed_abs, tag = 'smem constant byte address 0x4 - core index']
  #allocation1 [shape = 'u32[144,128]{1,0:T(1,128)}', space=vmem, size = 0x12000, scoped, tag = 'internal scratch']
  %s0 = inlined_call_operand.hbm [shape: bf16[32,96], index: 0, kind: input, shape index: {}]
  %s1 = inlined_call_operand.hbm [shape: bf16[96,256], index: 1, kind: input, shape index: {}]
  %s2 = inlined_call_operand.vmem [shape: f32[1,256], index: 2, kind: input, shape index: {}]
  %s3 = inlined_call_operand.hbm [shape: f32[32,64], index: 3, kind: output, shape index: {}]
  %s4 = sld [smem:[#allocation0]]
  $region30: #{tpu_custom_call.1} parent=0
    _
  %s6 = ssub.s32 1, %s4
  %s7 = scalar_select 0, %s6, %s4
  $region1: #{tpu_custom_call.1} parent=0
    #allocation2 [shape = 'u8[8192]{0}', space=vmem, size = 0x2000, scoped, tag = 'input window, operand 0, single buffered']
    #allocation3 [shape = 's32[1]{0}', space=sflag, size = 0x4, scoped, tag = 'scoped memory for tpu_custom_call.1']
    #allocation4 [shape = 's32[1]{0}', space=sflag, size = 0x4, scoped, tag = 'scoped memory for tpu_custom_call.1']
    #allocation5 [shape = 'u8[49152]{0}', space=vmem, size = 0xc000, scoped, tag = 'input window, operand 1, single buffered']
    #allocation6 [shape = 's32[1]{0}', space=sflag, size = 0x4, scoped, tag = 'scoped memory for tpu_custom_call.1']
    #allocation7 [shape = 'u8[16384]{0}', space=vmem, size = 0x4000, scoped, tag = 'output window, operand 0, single buffered']
    %8 = vsyncpa [#allocation3], 0
    %9 = vsyncpa [#allocation6], 0
    %10 = vsyncpa [#allocation4], 0
    // Predicated region
    $region2: #{tpu_custom_call.1} parent=1 // pred_check
      _
    $region3: #{tpu_custom_call.1} parent=1 // pred_check_branch
      %12 = sbr.rel (0) target = $region5
    $region4: #{tpu_custom_call.1} parent=1 // pred_region
      %s14 = ssub.s32 256, 256
      %15 = vsyncadd [#allocation3], %s14
      %s16 = sshll.u32 [#allocation2], 4
      %s17 = int_to_ptr.vmem [resolvable:$true] %s16
      %22 = dma.hbm_to_vmem [thread:$0]  %s0, 256, %s17, [#allocation3], 64, 64, 4
    $region5: #{tpu_custom_call.1} parent=1 // pred_fallthru
      _
    // Predicated region
    $region6: #{tpu_custom_call.1} parent=1 // pred_check
      _
    $region7: #{tpu_custom_call.1} parent=1 // pred_check_branch
      %24 = sbr.rel (0) target = $region9
    $region8: #{tpu_custom_call.1} parent=1 // pred_region
      %s26 = ssub.s32 1536, 1536
      %27 = vsyncadd [#allocation6], %s26
      %s28 = sshll.u32 [#allocation5], 4
      %s29 = int_to_ptr.vmem [resolvable:$true] %s28
      %34 = dma.hbm_to_vmem [thread:$0]  %s1, 1536, %s29, [#allocation6], 128, 128, 8
    $region9: #{tpu_custom_call.1} parent=1 // pred_fallthru
      _
    // Predicated region
    $region10: #{tpu_custom_call.1} parent=1 // pred_check
      _
    $region11: #{tpu_custom_call.1} parent=1 // pred_check_branch
      %36 = sbr.rel (0) target = $region13
    $region12: #{tpu_custom_call.1} parent=1 // pred_region
      _
    $region13: #{tpu_custom_call.1} parent=1 // pred_fallthru
      _
    // Predicated region
    $region14: #{tpu_custom_call.1} parent=1 // pred_check
      _
    $region15: #{tpu_custom_call.1} parent=1 // pred_check_branch
      %38 = sbr.rel (0) target = $region17
    $region16: #{tpu_custom_call.1} parent=1 // pred_region
      %39 = dma.done [#allocation3], 256
    $region17: #{tpu_custom_call.1} parent=1 // pred_fallthru
      _
    // Predicated region
    $region18: #{tpu_custom_call.1} parent=1 // pred_check
      _
    $region19: #{tpu_custom_call.1} parent=1 // pred_check_branch
      %41 = sbr.rel (0) target = $region21
    $region20: #{tpu_custom_call.1} parent=1 // pred_region
      %42 = dma.done [#allocation6], 1536
    $region21: #{tpu_custom_call.1} parent=1 // pred_fallthru
      _
    %v44 = vld [vmem:[#allocation2] sm:$0xf]
    %v45 = vld [vmem:[#allocation2 + $0x4] sm:$0xf]
    %v46 = vld [vmem:[#allocation2 + $0x8] sm:$0xf]
    %v47 = vld [vmem:[#allocation2 + $0xc] sm:$0xf]
    %v48 = vld [vmem:[#allocation5] sm:$0xff]
    %v49 = vld [vmem:[#allocation5 + $0x8] sm:$0xff]
    %v50 = vld [vmem:[#allocation5 + $0x10] sm:$0xff]
    %v51 = vld [vmem:[#allocation5 + $0x18] sm:$0xff]
    %v52 = vld [vmem:[#allocation5 + $0x20] sm:$0xff]
    %v53 = vld [vmem:[#allocation5 + $0x28] sm:$0xff]
    %v54 = vld [vmem:[#allocation5 + $0x30] sm:$0xff]
    %v55 = vld [vmem:[#allocation5 + $0x38] sm:$0xff]
    %v56 = vld [vmem:[#allocation5 + $0x40] sm:$0xff]
    %v57 = vld [vmem:[#allocation5 + $0x48] sm:$0xff]
    %v58 = vld [vmem:[#allocation5 + $0x50] sm:$0xff]
    %v59 = vld [vmem:[#allocation5 + $0x58] sm:$0xff]
    %v60 = vld [vmem:[%s2] sm:$0x3]
    %v62 = vlaneseq
    %v63 = vshrl.u32 %v62, 7
    %v64 = vsub.s32 0, %v63
    %v65 = vrot.slane %v60, %v64
    %v66 = vlaneseq
    %v67 = vshrl.u32 %v66, 7
    %v68 = vsub.s32 1, %v67
    %v69 = vrot.slane %v60, %v68
    %v76 = vunpack.c.l.b16 %v44
    %v77 = vunpack.c.l.b16 %v45
    %v78 = vunpack.c.l.b16 %v46
    %v79 = vunpack.c.l.b16 %v47
    %v80 = vpack.c.b16 %v77, %v76
    %v81 = vpack.c.b16 %v79, %v78
    %v94 = vunpack.c.l.b16 %v48
    %v95 = vunpack.c.h.b16 %v48
    %v96 = vunpack.c.l.b16 %v49
    %v97 = vunpack.c.h.b16 %v49
    %v98 = vunpack.c.l.b16 %v50
    %v99 = vunpack.c.h.b16 %v50
    %v100 = vunpack.c.l.b16 %v51
    %v101 = vunpack.c.h.b16 %v51
    %v102 = vunpack.c.l.b16 %v52
    %v103 = vunpack.c.h.b16 %v52
    %v104 = vunpack.c.l.b16 %v53
    %v105 = vunpack.c.h.b16 %v53
    %v106 = vunpack.c.l.b16 %v54
    %v107 = vunpack.c.h.b16 %v54
    %v108 = vunpack.c.l.b16 %v55
    %v109 = vunpack.c.h.b16 %v55
    %v110 = vunpack.c.l.b16 %v56
    %v111 = vunpack.c.h.b16 %v56
    %v112 = vunpack.c.l.b16 %v57
    %v113 = vunpack.c.h.b16 %v57
    %v114 = vunpack.c.l.b16 %v58
    %v115 = vunpack.c.h.b16 %v58
    %v116 = vunpack.c.l.b16 %v59
    %v117 = vunpack.c.h.b16 %v59
    %v118 = vpack.c.b16 %v96, %v94
    %v119 = vpack.c.b16 %v97, %v95
    %v120 = vpack.c.b16 %v100, %v98
    %v121 = vpack.c.b16 %v101, %v99
    %v122 = vpack.c.b16 %v104, %v102
    %v123 = vpack.c.b16 %v105, %v103
    %v124 = vpack.c.b16 %v108, %v106
    %v125 = vpack.c.b16 %v109, %v107
    %v126 = vpack.c.b16 %v112, %v110
    %v127 = vpack.c.b16 %v113, %v111
    %v128 = vpack.c.b16 %v116, %v114
    %v129 = vpack.c.b16 %v117, %v115
    %vm142 = vcmask 785408
    %v144 = vsel %vm142, %v80, 0
    %v147 = vsel %vm142, %v81, 0
    %149 = vmatprep.subr.bf16.mxu0 %v119
    %150 = vmatpush1.bf16.msra.mxu0 %v118
    %151 = vmatprep.subr.bf16.mxu0 %v121
    %152 = vmatpush1.bf16.msra.mxu0 %v120
    %153 = vmatprep.subr.bf16.mxu0 %v123
    %154 = vmatpush1.bf16.msra.mxu0 %v122
    %155 = vmatprep.subr.bf16.mxu0 %v125
    %156 = vmatpush1.bf16.msra.mxu0 %v124
    %157 = vmatprep.subr.bf16.mxu0 %v127
    %158 = vmatpush1.bf16.msra.mxu0 %v126
    %159 = vmatprep.subr.bf16.mxu0 %v129
    %160 = vmatpush1.bf16.msra.mxu0 %v128
    %161 = vmatprep.subr.bf16.mxu0 0
    %162 = vmatpush1.bf16.msra.mxu0 0
    %163 = vmatprep.subr.bf16.mxu0 0
    %164 = vmatpush1.bf16.msra.mxu0 0
    %165 = vmatprep.subr.bf16.mxu0 0
    %166 = vmatpush1.bf16.msra.mxu0 0
    %167 = vmatprep.subr.bf16.mxu0 0
    %168 = vmatpush1.bf16.msra.mxu0 0
    %169 = vmatprep.subr.bf16.mxu0 0
    %170 = vmatpush1.bf16.msra.mxu0 0
    %171 = vmatprep.subr.bf16.mxu0 0
    %172 = vmatpush1.bf16.msra.mxu0 0
    %173 = vmatprep.subr.bf16.mxu0 0
    %174 = vmatpush1.bf16.msra.mxu0 0
    %175 = vmatprep.subr.bf16.mxu0 0
    %176 = vmatpush1.bf16.msra.mxu0 0
    %177 = vmatprep.subr.bf16.mxu0 0
    %178 = vmatpush1.bf16.msra.mxu0 0
    %179 = vmatprep.subr.bf16.mxu0 0
    %180 = vmatpush1.bf16.msra.mxu0 0
    %181 = vmatprep.mubr.bf16.mxu0 0
    %182 = vmatmul.mubr.bf16.gmra.mrb[0].mxu0 %v144
    %v183 = vpop.f32.mrb[0].mxu0
    %v184 = vadd.f32 %v65, %v183
    %v185 = vpop.f32.mrb[0].mxu0
    %v186 = vadd.f32 %v69, %v185
    %v187 = vpop.f32.mrb[0].mxu0
    %v188 = vadd.f32 %v65, %v187
    %v189 = vpop.f32.mrb[0].mxu0
    %v190 = vadd.f32 %v69, %v189
    %191 = vmatprep.mubr.bf16.mxu0 0
    %192 = vmatmul.mubr.bf16.gmra.mrb[0].mxu0 %v147
    %v193 = vpop.f32.mrb[0].mxu0
    %v194 = vadd.f32 %v65, %v193
    %v195 = vpop.f32.mrb[0].mxu0
    %v196 = vadd.f32 %v69, %v195
    %v197 = vpop.f32.mrb[0].mxu0
    %v198 = vadd.f32 %v65, %v197
    %v199 = vpop.f32.mrb[0].mxu0
    %v200 = vadd.f32 %v69, %v199
    %201 = vdwg.mxu0
    %vm202 = vcmask 523264
    %v203 = vsel %vm202, %v184, 0.0
    %v204 = vrot.slane %v203, 4
    %v205 = vadd.f32 %v203, %v204
    %v206 = vrot.slane %v205, 2
    %v207 = vadd.f32 %v205, %v206
    %v208 = vrot.slane %v207, 1
    %v209 = vadd.f32 %v207, %v208
    %v210 = vsel %vm202, %v188, 0.0
    %v211 = vrot.slane %v210, 4
    %v212 = vadd.f32 %v210, %v211
    %v213 = vrot.slane %v212, 2
    %v214 = vadd.f32 %v212, %v213
    %v215 = vrot.slane %v214, 1
    %v216 = vadd.f32 %v214, %v215
    %v217 = vsel %vm202, %v194, 0.0
    %v218 = vrot.slane %v217, 4
    %v219 = vadd.f32 %v217, %v218
    %v220 = vrot.slane %v219, 2
    %v221 = vadd.f32 %v219, %v220
    %v222 = vrot.slane %v221, 1
    %v223 = vadd.f32 %v221, %v222
    %v224 = vsel %vm202, %v198, 0.0
    %v225 = vrot.slane %v224, 4
    %v226 = vadd.f32 %v224, %v225
    %v227 = vrot.slane %v226, 2
    %v228 = vadd.f32 %v226, %v227
    %v229 = vrot.slane %v228, 1
    %v230 = vadd.f32 %v228, %v229
    %v231 = vrcp.pop 8.0
    %v232 = vmul.f32 %v209, %v231
    %v233 = vmul.f32 %v216, %v231
    %v234 = vmul.f32 %v223, %v231
    %v235 = vmul.f32 %v230, %v231
    %v236 = vsub.f32 %v184, %v232
    %v237 = vsub.f32 %v188, %v233
    %v238 = vsub.f32 %v194, %v234
    %v239 = vsub.f32 %v198, %v235
    %v240 = vsel %vm202, %v186, 0.0
    %v241 = vrot.slane %v240, 4
    %v242 = vadd.f32 %v240, %v241
    %v243 = vrot.slane %v242, 2
    %v244 = vadd.f32 %v242, %v243
    %v245 = vrot.slane %v244, 1
    %v246 = vadd.f32 %v244, %v245
    %v247 = vsel %vm202, %v190, 0.0
    %v248 = vrot.slane %v247, 4
    %v249 = vadd.f32 %v247, %v248
    %v250 = vrot.slane %v249, 2
    %v251 = vadd.f32 %v249, %v250
    %v252 = vrot.slane %v251, 1
    %v253 = vadd.f32 %v251, %v252
    %v254 = vsel %vm202, %v196, 0.0
    %v255 = vrot.slane %v254, 4
    %v256 = vadd.f32 %v254, %v255
    %v257 = vrot.slane %v256, 2
    %v258 = vadd.f32 %v256, %v257
    %v259 = vrot.slane %v258, 1
    %v260 = vadd.f32 %v258, %v259
    %v261 = vsel %vm202, %v200, 0.0
    %v262 = vrot.slane %v261, 4
    %v263 = vadd.f32 %v261, %v262
    %v264 = vrot.slane %v263, 2
    %v265 = vadd.f32 %v263, %v264
    %v266 = vrot.slane %v265, 1
    %v267 = vadd.f32 %v265, %v266
    %v268 = vmul.f32 %v246, %v231
    %v269 = vmul.f32 %v253, %v231
    %v270 = vmul.f32 %v260, %v231
    %v271 = vmul.f32 %v267, %v231
    %v272 = vsub.f32 %v186, %v268
    %v273 = vsub.f32 %v190, %v269
    %v274 = vsub.f32 %v196, %v270
    %v275 = vsub.f32 %v200, %v271
    %v276 = vpack.c.bf16 %v236, %v236
    %v277 = vpack.c.bf16 %v237, %v237
    %v278 = vpack.c.bf16 %v238, %v238
    %v279 = vpack.c.bf16 %v239, %v239
    %v280 = vpack.c.bf16 %v272, %v272
    %v281 = vpack.c.bf16 %v273, %v273
    %v282 = vpack.c.bf16 %v274, %v274
    %v283 = vpack.c.bf16 %v275, %v275
    %v284 = vpack.c.bf16 %v186, %v186
    %v285 = vpack.c.bf16 %v190, %v190
    %v286 = vpack.c.bf16 %v196, %v196
    %v287 = vpack.c.bf16 %v200, %v200
    %vm288 = vcmask 261120
    %v290 = vsel %vm288, %v276, 0
    %v293 = vsel %vm288, %v280, 0
    %295 = vmatprep.subr.bf16.mxu0 0
    %296 = vmatpush1.bf16.xpose.msra.mxu0 %v293
    %297 = vmatprep.subr.bf16.mxu0 0
    %298 = vmatpush1.bf16.xpose.msra.mxu0 0
    %299 = vmatprep.subr.bf16.mxu0 0
    %300 = vmatpush1.bf16.xpose.msra.mxu0 0
    %301 = vmatprep.subr.bf16.mxu0 0
    %302 = vmatpush1.bf16.xpose.msra.mxu0 0
    %303 = vmatprep.subr.bf16.mxu0 0
    %304 = vmatpush1.bf16.xpose.msra.mxu0 0
    %305 = vmatprep.subr.bf16.mxu0 0
    %306 = vmatpush1.bf16.xpose.msra.mxu0 0
    %307 = vmatprep.subr.bf16.mxu0 0
    %308 = vmatpush1.bf16.xpose.msra.mxu0 0
    %309 = vmatprep.subr.bf16.mxu0 0
    %310 = vmatpush1.bf16.xpose.msra.mxu0 0
    %311 = vmatprep.subr.bf16.mxu0 0
    %312 = vmatpush1.bf16.xpose.msra.mxu0 0
    %313 = vmatprep.subr.bf16.mxu0 0
    %314 = vmatpush1.bf16.xpose.msra.mxu0 0
    %315 = vmatprep.subr.bf16.mxu0 0
    %316 = vmatpush1.bf16.xpose.msra.mxu0 0
    %317 = vmatprep.subr.bf16.mxu0 0
    %318 = vmatpush1.bf16.xpose.msra.mxu0 0
    %319 = vmatprep.subr.bf16.mxu0 0
    %320 = vmatpush1.bf16.xpose.msra.mxu0 0
    %321 = vmatprep.subr.bf16.mxu0 0
    %322 = vmatpush1.bf16.xpose.msra.mxu0 0
    %323 = vmatprep.subr.bf16.mxu0 0
    %324 = vmatpush1.bf16.xpose.msra.mxu0 0
    %325 = vmatprep.subr.bf16.mxu0 0
    %326 = vmatpush1.bf16.xpose.msra.mxu0 0
    %327 = vmatprep.mubr.bf16.mxu0 0
    %328 = vmatmul.mubr.bf16.gmra.mrb[0].mxu0 %v290
    %v329 = vpop.f32.mrb[0].mxu0
    %v330 = vadd.f32 0.0, %v329
    %v331 = vpop.f32.mrb[0].mxu0
    %v332 = vpop.f32.mrb[0].mxu0
    %v333 = vpop.f32.mrb[0].mxu0
    %334 = vdwg.mxu0
    %v336 = vsel %vm288, %v277, 0
    %v339 = vsel %vm288, %v281, 0
    %341 = vmatprep.subr.bf16.mxu0 0
    %342 = vmatpush1.bf16.xpose.msra.mxu0 %v339
    %343 = vmatprep.subr.bf16.mxu0 0
    %344 = vmatpush1.bf16.xpose.msra.mxu0 0
    %345 = vmatprep.subr.bf16.mxu0 0
    %346 = vmatpush1.bf16.xpose.msra.mxu0 0
    %347 = vmatprep.subr.bf16.mxu0 0
    %348 = vmatpush1.bf16.xpose.msra.mxu0 0
    %349 = vmatprep.subr.bf16.mxu0 0
    %350 = vmatpush1.bf16.xpose.msra.mxu0 0
    %351 = vmatprep.subr.bf16.mxu0 0
    %352 = vmatpush1.bf16.xpose.msra.mxu0 0
    %353 = vmatprep.subr.bf16.mxu0 0
    %354 = vmatpush1.bf16.xpose.msra.mxu0 0
    %355 = vmatprep.subr.bf16.mxu0 0
    %356 = vmatpush1.bf16.xpose.msra.mxu0 0
    %357 = vmatprep.subr.bf16.mxu0 0
    %358 = vmatpush1.bf16.xpose.msra.mxu0 0
    %359 = vmatprep.subr.bf16.mxu0 0
    %360 = vmatpush1.bf16.xpose.msra.mxu0 0
    %361 = vmatprep.subr.bf16.mxu0 0
    %362 = vmatpush1.bf16.xpose.msra.mxu0 0
    %363 = vmatprep.subr.bf16.mxu0 0
    %364 = vmatpush1.bf16.xpose.msra.mxu0 0
    %365 = vmatprep.subr.bf16.mxu0 0
    %366 = vmatpush1.bf16.xpose.msra.mxu0 0
    %367 = vmatprep.subr.bf16.mxu0 0
    %368 = vmatpush1.bf16.xpose.msra.mxu0 0
    %369 = vmatprep.subr.bf16.mxu0 0
    %370 = vmatpush1.bf16.xpose.msra.mxu0 0
    %371 = vmatprep.subr.bf16.mxu0 0
    %372 = vmatpush1.bf16.xpose.msra.mxu0 0
    %373 = vmatprep.mubr.bf16.mxu0 0
    %374 = vmatmul.mubr.bf16.gmra.mrb[0].mxu0 %v336
    %v375 = vpop.f32.mrb[0].mxu0
    %v376 = vadd.f32 0.0, %v375
    %v377 = vpop.f32.mrb[0].mxu0
    %v378 = vpop.f32.mrb[0].mxu0
    %v379 = vpop.f32.mrb[0].mxu0
    %380 = vdwg.mxu0
    %v382 = vsel %vm288, %v278, 0
    %v385 = vsel %vm288, %v282, 0
    %387 = vmatprep.subr.bf16.mxu0 0
    %388 = vmatpush1.bf16.xpose.msra.mxu0 %v385
    %389 = vmatprep.subr.bf16.mxu0 0
    %390 = vmatpush1.bf16.xpose.msra.mxu0 0
    %391 = vmatprep.subr.bf16.mxu0 0
    %392 = vmatpush1.bf16.xpose.msra.mxu0 0
    %393 = vmatprep.subr.bf16.mxu0 0
    %394 = vmatpush1.bf16.xpose.msra.mxu0 0
    %395 = vmatprep.subr.bf16.mxu0 0
    %396 = vmatpush1.bf16.xpose.msra.mxu0 0
    %397 = vmatprep.subr.bf16.mxu0 0
    %398 = vmatpush1.bf16.xpose.msra.mxu0 0
    %399 = vmatprep.subr.bf16.mxu0 0
    %400 = vmatpush1.bf16.xpose.msra.mxu0 0
    %401 = vmatprep.subr.bf16.mxu0 0
    %402 = vmatpush1.bf16.xpose.msra.mxu0 0
    %403 = vmatprep.subr.bf16.mxu0 0
    %404 = vmatpush1.bf16.xpose.msra.mxu0 0
    %405 = vmatprep.subr.bf16.mxu0 0
    %406 = vmatpush1.bf16.xpose.msra.mxu0 0
    %407 = vmatprep.subr.bf16.mxu0 0
    %408 = vmatpush1.bf16.xpose.msra.mxu0 0
    %409 = vmatprep.subr.bf16.mxu0 0
    %410 = vmatpush1.bf16.xpose.msra.mxu0 0
    %411 = vmatprep.subr.bf16.mxu0 0
    %412 = vmatpush1.bf16.xpose.msra.mxu0 0
    %413 = vmatprep.subr.bf16.mxu0 0
    %414 = vmatpush1.bf16.xpose.msra.mxu0 0
    %415 = vmatprep.subr.bf16.mxu0 0
    %416 = vmatpush1.bf16.xpose.msra.mxu0 0
    %417 = vmatprep.subr.bf16.mxu0 0
    %418 = vmatpush1.bf16.xpose.msra.mxu0 0
    %419 = vmatprep.mubr.bf16.mxu0 0
    %420 = vmatmul.mubr.bf16.gmra.mrb[0].mxu0 %v382
    %v421 = vpop.f32.mrb[0].mxu0
    %v422 = vadd.f32 0.0, %v421
    %v423 = vpop.f32.mrb[0].mxu0
    %v424 = vpop.f32.mrb[0].mxu0
    %v425 = vpop.f32.mrb[0].mxu0
    %426 = vdwg.mxu0
    %v428 = vsel %vm288, %v279, 0
    %v431 = vsel %vm288, %v283, 0
    %433 = vmatprep.subr.bf16.mxu0 0
    %434 = vmatpush1.bf16.xpose.msra.mxu0 %v431
    %435 = vmatprep.subr.bf16.mxu0 0
    %436 = vmatpush1.bf16.xpose.msra.mxu0 0
    %437 = vmatprep.subr.bf16.mxu0 0
    %438 = vmatpush1.bf16.xpose.msra.mxu0 0
    %439 = vmatprep.subr.bf16.mxu0 0
    %440 = vmatpush1.bf16.xpose.msra.mxu0 0
    %441 = vmatprep.subr.bf16.mxu0 0
    %442 = vmatpush1.bf16.xpose.msra.mxu0 0
    %443 = vmatprep.subr.bf16.mxu0 0
    %444 = vmatpush1.bf16.xpose.msra.mxu0 0
    %445 = vmatprep.subr.bf16.mxu0 0
    %446 = vmatpush1.bf16.xpose.msra.mxu0 0
    %447 = vmatprep.subr.bf16.mxu0 0
    %448 = vmatpush1.bf16.xpose.msra.mxu0 0
    %449 = vmatprep.subr.bf16.mxu0 0
    %450 = vmatpush1.bf16.xpose.msra.mxu0 0
    %451 = vmatprep.subr.bf16.mxu0 0
    %452 = vmatpush1.bf16.xpose.msra.mxu0 0
    %453 = vmatprep.subr.bf16.mxu0 0
    %454 = vmatpush1.bf16.xpose.msra.mxu0 0
    %455 = vmatprep.subr.bf16.mxu0 0
    %456 = vmatpush1.bf16.xpose.msra.mxu0 0
    %457 = vmatprep.subr.bf16.mxu0 0
    %458 = vmatpush1.bf16.xpose.msra.mxu0 0
    %459 = vmatprep.subr.bf16.mxu0 0
    %460 = vmatpush1.bf16.xpose.msra.mxu0 0
    %461 = vmatprep.subr.bf16.mxu0 0
    %462 = vmatpush1.bf16.xpose.msra.mxu0 0
    %463 = vmatprep.subr.bf16.mxu0 0
    %464 = vmatpush1.bf16.xpose.msra.mxu0 0
    %465 = vmatprep.mubr.bf16.mxu0 0
    %466 = vmatmul.mubr.bf16.gmra.mrb[0].mxu0 %v428
    %v467 = vpop.f32.mrb[0].mxu0
    %v468 = vadd.f32 0.0, %v467
    %v469 = vpop.f32.mrb[0].mxu0
    %v470 = vpop.f32.mrb[0].mxu0
    %v471 = vpop.f32.mrb[0].mxu0
    %472 = vdwg.mxu0
    %vm473 = vcmask 64512
    %v474 = vsel %vm473, %v330, -inf
    %475 = vmax.xlane.f32.xlu0 %v474
    %v476 = vpop.xlane.xlu0 %475
    %v477 = vsel %vm473, %v376, -inf
    %478 = vmax.xlane.f32.xlu0 %v477
    %v479 = vpop.xlane.xlu0 %478
    %v480 = vsel %vm473, %v422, -inf
    %481 = vmax.xlane.f32.xlu0 %v480
    %v482 = vpop.xlane.xlu0 %481
    %v483 = vsel %vm473, %v468, -inf
    %484 = vmax.xlane.f32.xlu0 %v483
    %v485 = vpop.xlane.xlu0 %484
    %v486 = vsub.f32 %v330, %v476
    %v487 = vsub.f32 %v376, %v479
    %v488 = vsub.f32 %v422, %v482
    %v489 = vsub.f32 %v468, %v485
    %v490 = vmul.f32 %v486, 1.442695
    %v491 = vpow.pop %v490
    %v492 = vmul.f32 %v487, 1.442695
    %v493 = vpow.pop %v492
    %v494 = vmul.f32 %v488, 1.442695
    %v495 = vpow.pop %v494
    %v496 = vmul.f32 %v489, 1.442695
    %v497 = vpow.pop %v496
    %v498 = vsel %vm473, %v491, 0.0
    %499 = vadd.xlane.f32.xlu0 %v498
    %v500 = vpop.xlane.xlu0 %499
    %v501 = vsel %vm473, %v493, 0.0
    %502 = vadd.xlane.f32.xlu0 %v501
    %v503 = vpop.xlane.xlu0 %502
    %v504 = vsel %vm473, %v495, 0.0
    %505 = vadd.xlane.f32.xlu0 %v504
    %v506 = vpop.xlane.xlu0 %505
    %v507 = vsel %vm473, %v497, 0.0
    %508 = vadd.xlane.f32.xlu0 %v507
    %v509 = vpop.xlane.xlu0 %508
    %v510 = vrcp.pop %v500
    %v511 = vrcp.pop %v503
    %v512 = vrcp.pop %v506
    %v513 = vrcp.pop %v509
    %v514 = vmul.f32 %v491, %v510
    %v515 = vmul.f32 %v493, %v511
    %v516 = vmul.f32 %v495, %v512
    %v517 = vmul.f32 %v497, %v513
    %v518 = vadd.f32 %v514, 1.0
    %v519 = vadd.f32 %v515, 1.0
    %v520 = vadd.f32 %v516, 1.0
    %v521 = vadd.f32 %v517, 1.0
    %v522 = vpack.c.bf16 %v518, %v518
    %v523 = vpack.c.bf16 %v519, %v519
    %v524 = vpack.c.bf16 %v520, %v520
    %v525 = vpack.c.bf16 %v521, %v521
    %527 = vrot.lane.b32.xlu0 %v284, 64
    %v528 = vpop.permute.xlu0 %527
    %v530 = vsel %vm473, %v522, 0
    %vm532 = vcmask 1043456
    %v534 = vsel %vm532, %v528, 0
    %536 = vmatprep.subr.bf16.mxu0 0
    %537 = vmatpush1.bf16.msra.mxu0 %v534
    %538 = vmatprep.subr.bf16.mxu0 0
    %539 = vmatpush1.bf16.msra.mxu0 0
    %540 = vmatprep.subr.bf16.mxu0 0
    %541 = vmatpush1.bf16.msra.mxu0 0
    %542 = vmatprep.subr.bf16.mxu0 0
    %543 = vmatpush1.bf16.msra.mxu0 0
    %544 = vmatprep.subr.bf16.mxu0 0
    %545 = vmatpush1.bf16.msra.mxu0 0
    %546 = vmatprep.subr.bf16.mxu0 0
    %547 = vmatpush1.bf16.msra.mxu0 0
    %548 = vmatprep.subr.bf16.mxu0 0
    %549 = vmatpush1.bf16.msra.mxu0 0
    %550 = vmatprep.subr.bf16.mxu0 0
    %551 = vmatpush1.bf16.msra.mxu0 0
    %552 = vmatprep.subr.bf16.mxu0 0
    %553 = vmatpush1.bf16.msra.mxu0 0
    %554 = vmatprep.subr.bf16.mxu0 0
    %555 = vmatpush1.bf16.msra.mxu0 0
    %556 = vmatprep.subr.bf16.mxu0 0
    %557 = vmatpush1.bf16.msra.mxu0 0
    %558 = vmatprep.subr.bf16.mxu0 0
    %559 = vmatpush1.bf16.msra.mxu0 0
    %560 = vmatprep.subr.bf16.mxu0 0
    %561 = vmatpush1.bf16.msra.mxu0 0
    %562 = vmatprep.subr.bf16.mxu0 0
    %563 = vmatpush1.bf16.msra.mxu0 0
    %564 = vmatprep.subr.bf16.mxu0 0
    %565 = vmatpush1.bf16.msra.mxu0 0
    %566 = vmatprep.subr.bf16.mxu0 0
    %567 = vmatpush1.bf16.msra.mxu0 0
    %568 = vmatprep.mubr.bf16.mxu0 0
    %569 = vmatmul.mubr.bf16.gmra.mrb[0].mxu0 %v530
    %v570 = vpop.f32.mrb[0].mxu0
    %v571 = vadd.f32 0.0, %v570
    %v572 = vpop.f32.mrb[0].mxu0
    %v573 = vpop.f32.mrb[0].mxu0
    %v574 = vpop.f32.mrb[0].mxu0
    %575 = vdwg.mxu0
    %577 = vrot.lane.b32.xlu0 %v285, 64
    %v578 = vpop.permute.xlu0 %577
    %v580 = vsel %vm473, %v523, 0
    %v583 = vsel %vm532, %v578, 0
    %585 = vmatprep.subr.bf16.mxu0 0
    %586 = vmatpush1.bf16.msra.mxu0 %v583
    %587 = vmatprep.subr.bf16.mxu0 0
    %588 = vmatpush1.bf16.msra.mxu0 0
    %589 = vmatprep.subr.bf16.mxu0 0
    %590 = vmatpush1.bf16.msra.mxu0 0
    %591 = vmatprep.subr.bf16.mxu0 0
    %592 = vmatpush1.bf16.msra.mxu0 0
    %593 = vmatprep.subr.bf16.mxu0 0
    %594 = vmatpush1.bf16.msra.mxu0 0
    %595 = vmatprep.subr.bf16.mxu0 0
    %596 = vmatpush1.bf16.msra.mxu0 0
    %597 = vmatprep.subr.bf16.mxu0 0
    %598 = vmatpush1.bf16.msra.mxu0 0
    %599 = vmatprep.subr.bf16.mxu0 0
    %600 = vmatpush1.bf16.msra.mxu0 0
    %601 = vmatprep.subr.bf16.mxu0 0
    %602 = vmatpush1.bf16.msra.mxu0 0
    %603 = vmatprep.subr.bf16.mxu0 0
    %604 = vmatpush1.bf16.msra.mxu0 0
    %605 = vmatprep.subr.bf16.mxu0 0
    %606 = vmatpush1.bf16.msra.mxu0 0
    %607 = vmatprep.subr.bf16.mxu0 0
    %608 = vmatpush1.bf16.msra.mxu0 0
    %609 = vmatprep.subr.bf16.mxu0 0
    %610 = vmatpush1.bf16.msra.mxu0 0
    %611 = vmatprep.subr.bf16.mxu0 0
    %612 = vmatpush1.bf16.msra.mxu0 0
    %613 = vmatprep.subr.bf16.mxu0 0
    %614 = vmatpush1.bf16.msra.mxu0 0
    %615 = vmatprep.subr.bf16.mxu0 0
    %616 = vmatpush1.bf16.msra.mxu0 0
    %617 = vmatprep.mubr.bf16.mxu0 0
    %618 = vmatmul.mubr.bf16.gmra.mrb[0].mxu0 %v580
    %v619 = vpop.f32.mrb[0].mxu0
    %v620 = vadd.f32 0.0, %v619
    %v621 = vpop.f32.mrb[0].mxu0
    %v622 = vpop.f32.mrb[0].mxu0
    %v623 = vpop.f32.mrb[0].mxu0
    %624 = vdwg.mxu0
    %626 = vrot.lane.b32.xlu0 %v286, 64
    %v627 = vpop.permute.xlu0 %626
    %v629 = vsel %vm473, %v524, 0
    %v632 = vsel %vm532, %v627, 0
    %634 = vmatprep.subr.bf16.mxu0 0
    %635 = vmatpush1.bf16.msra.mxu0 %v632
    %636 = vmatprep.subr.bf16.mxu0 0
    %637 = vmatpush1.bf16.msra.mxu0 0
    %638 = vmatprep.subr.bf16.mxu0 0
    %639 = vmatpush1.bf16.msra.mxu0 0
    %640 = vmatprep.subr.bf16.mxu0 0
    %641 = vmatpush1.bf16.msra.mxu0 0
    %642 = vmatprep.subr.bf16.mxu0 0
    %643 = vmatpush1.bf16.msra.mxu0 0
    %644 = vmatprep.subr.bf16.mxu0 0
    %645 = vmatpush1.bf16.msra.mxu0 0
    %646 = vmatprep.subr.bf16.mxu0 0
    %647 = vmatpush1.bf16.msra.mxu0 0
    %648 = vmatprep.subr.bf16.mxu0 0
    %649 = vmatpush1.bf16.msra.mxu0 0
    %650 = vmatprep.subr.bf16.mxu0 0
    %651 = vmatpush1.bf16.msra.mxu0 0
    %652 = vmatprep.subr.bf16.mxu0 0
    %653 = vmatpush1.bf16.msra.mxu0 0
    %654 = vmatprep.subr.bf16.mxu0 0
    %655 = vmatpush1.bf16.msra.mxu0 0
    %656 = vmatprep.subr.bf16.mxu0 0
    %657 = vmatpush1.bf16.msra.mxu0 0
    %658 = vmatprep.subr.bf16.mxu0 0
    %659 = vmatpush1.bf16.msra.mxu0 0
    %660 = vmatprep.subr.bf16.mxu0 0
    %661 = vmatpush1.bf16.msra.mxu0 0
    %662 = vmatprep.subr.bf16.mxu0 0
    %663 = vmatpush1.bf16.msra.mxu0 0
    %664 = vmatprep.subr.bf16.mxu0 0
    %665 = vmatpush1.bf16.msra.mxu0 0
    %666 = vmatprep.mubr.bf16.mxu0 0
    %667 = vmatmul.mubr.bf16.gmra.mrb[0].mxu0 %v629
    %v668 = vpop.f32.mrb[0].mxu0
    %v669 = vadd.f32 0.0, %v668
    %v670 = vpop.f32.mrb[0].mxu0
    %v671 = vpop.f32.mrb[0].mxu0
    %v672 = vpop.f32.mrb[0].mxu0
    %673 = vdwg.mxu0
    %675 = vrot.lane.b32.xlu0 %v287, 64
    %v676 = vpop.permute.xlu0 %675
    %v678 = vsel %vm473, %v525, 0
    %v681 = vsel %vm532, %v676, 0
    %683 = vmatprep.subr.bf16.mxu0 0
    %684 = vmatpush1.bf16.msra.mxu0 %v681
    %685 = vmatprep.subr.bf16.mxu0 0
    %686 = vmatpush1.bf16.msra.mxu0 0
    %687 = vmatprep.subr.bf16.mxu0 0
    %688 = vmatpush1.bf16.msra.mxu0 0
    %689 = vmatprep.subr.bf16.mxu0 0
    %690 = vmatpush1.bf16.msra.mxu0 0
    %691 = vmatprep.subr.bf16.mxu0 0
    %692 = vmatpush1.bf16.msra.mxu0 0
    %693 = vmatprep.subr.bf16.mxu0 0
    %694 = vmatpush1.bf16.msra.mxu0 0
    %695 = vmatprep.subr.bf16.mxu0 0
    %696 = vmatpush1.bf16.msra.mxu0 0
    %697 = vmatprep.subr.bf16.mxu0 0
    %698 = vmatpush1.bf16.msra.mxu0 0
    %699 = vmatprep.subr.bf16.mxu0 0
    %700 = vmatpush1.bf16.msra.mxu0 0
    %701 = vmatprep.subr.bf16.mxu0 0
    %702 = vmatpush1.bf16.msra.mxu0 0
    %703 = vmatprep.subr.bf16.mxu0 0
    %704 = vmatpush1.bf16.msra.mxu0 0
    %705 = vmatprep.subr.bf16.mxu0 0
    %706 = vmatpush1.bf16.msra.mxu0 0
    %707 = vmatprep.subr.bf16.mxu0 0
    %708 = vmatpush1.bf16.msra.mxu0 0
    %709 = vmatprep.subr.bf16.mxu0 0
    %710 = vmatpush1.bf16.msra.mxu0 0
    %711 = vmatprep.subr.bf16.mxu0 0
    %712 = vmatpush1.bf16.msra.mxu0 0
    %713 = vmatprep.subr.bf16.mxu0 0
    %714 = vmatpush1.bf16.msra.mxu0 0
    %715 = vmatprep.mubr.bf16.mxu0 0
    %716 = vmatmul.mubr.bf16.gmra.mrb[0].mxu0 %v678
    %v717 = vpop.f32.mrb[0].mxu0
    %v718 = vadd.f32 0.0, %v717
    %v719 = vpop.f32.mrb[0].mxu0
    %v720 = vpop.f32.mrb[0].mxu0
    %v721 = vpop.f32.mrb[0].mxu0
    %722 = vdwg.mxu0
    %724 = vrot.lane.b32.xlu0 %v276, 96
    %v725 = vpop.permute.xlu0 %724
    %727 = vrot.lane.b32.xlu0 %v280, 96
    %v728 = vpop.permute.xlu0 %727
    %v730 = vsel %vm288, %v725, 0
    %v733 = vsel %vm288, %v728, 0
    %735 = vmatprep.subr.bf16.mxu0 0
    %736 = vmatpush1.bf16.xpose.msra.mxu0 %v733
    %737 = vmatprep.subr.bf16.mxu0 0
    %738 = vmatpush1.bf16.xpose.msra.mxu0 0
    %739 = vmatprep.subr.bf16.mxu0 0
    %740 = vmatpush1.bf16.xpose.msra.mxu0 0
    %741 = vmatprep.subr.bf16.mxu0 0
    %742 = vmatpush1.bf16.xpose.msra.mxu0 0
    %743 = vmatprep.subr.bf16.mxu0 0
    %744 = vmatpush1.bf16.xpose.msra.mxu0 0
    %745 = vmatprep.subr.bf16.mxu0 0
    %746 = vmatpush1.bf16.xpose.msra.mxu0 0
    %747 = vmatprep.subr.bf16.mxu0 0
    %748 = vmatpush1.bf16.xpose.msra.mxu0 0
    %749 = vmatprep.subr.bf16.mxu0 0
    %750 = vmatpush1.bf16.xpose.msra.mxu0 0
    %751 = vmatprep.subr.bf16.mxu0 0
    %752 = vmatpush1.bf16.xpose.msra.mxu0 0
    %753 = vmatprep.subr.bf16.mxu0 0
    %754 = vmatpush1.bf16.xpose.msra.mxu0 0
    %755 = vmatprep.subr.bf16.mxu0 0
    %756 = vmatpush1.bf16.xpose.msra.mxu0 0
    %757 = vmatprep.subr.bf16.mxu0 0
    %758 = vmatpush1.bf16.xpose.msra.mxu0 0
    %759 = vmatprep.subr.bf16.mxu0 0
    %760 = vmatpush1.bf16.xpose.msra.mxu0 0
    %761 = vmatprep.subr.bf16.mxu0 0
    %762 = vmatpush1.bf16.xpose.msra.mxu0 0
    %763 = vmatprep.subr.bf16.mxu0 0
    %764 = vmatpush1.bf16.xpose.msra.mxu0 0
    %765 = vmatprep.subr.bf16.mxu0 0
    %766 = vmatpush1.bf16.xpose.msra.mxu0 0
    %767 = vmatprep.mubr.bf16.mxu0 0
    %768 = vmatmul.mubr.bf16.gmra.mrb[0].mxu0 %v730
    %v769 = vpop.f32.mrb[0].mxu0
    %v770 = vadd.f32 0.0, %v769
    %v771 = vpop.f32.mrb[0].mxu0
    %v772 = vpop.f32.mrb[0].mxu0
    %v773 = vpop.f32.mrb[0].mxu0
    %774 = vdwg.mxu0
    %776 = vrot.lane.b32.xlu0 %v277, 96
    %v777 = vpop.permute.xlu0 %776
    %779 = vrot.lane.b32.xlu0 %v281, 96
    %v780 = vpop.permute.xlu0 %779
    %v782 = vsel %vm288, %v777, 0
    %v785 = vsel %vm288, %v780, 0
    %787 = vmatprep.subr.bf16.mxu0 0
    %788 = vmatpush1.bf16.xpose.msra.mxu0 %v785
    %789 = vmatprep.subr.bf16.mxu0 0
    %790 = vmatpush1.bf16.xpose.msra.mxu0 0
    %791 = vmatprep.subr.bf16.mxu0 0
    %792 = vmatpush1.bf16.xpose.msra.mxu0 0
    %793 = vmatprep.subr.bf16.mxu0 0
    %794 = vmatpush1.bf16.xpose.msra.mxu0 0
    %795 = vmatprep.subr.bf16.mxu0 0
    %796 = vmatpush1.bf16.xpose.msra.mxu0 0
    %797 = vmatprep.subr.bf16.mxu0 0
    %798 = vmatpush1.bf16.xpose.msra.mxu0 0
    %799 = vmatprep.subr.bf16.mxu0 0
    %800 = vmatpush1.bf16.xpose.msra.mxu0 0
    %801 = vmatprep.subr.bf16.mxu0 0
    %802 = vmatpush1.bf16.xpose.msra.mxu0 0
    %803 = vmatprep.subr.bf16.mxu0 0
    %804 = vmatpush1.bf16.xpose.msra.mxu0 0
    %805 = vmatprep.subr.bf16.mxu0 0
    %806 = vmatpush1.bf16.xpose.msra.mxu0 0
    %807 = vmatprep.subr.bf16.mxu0 0
    %808 = vmatpush1.bf16.xpose.msra.mxu0 0
    %809 = vmatprep.subr.bf16.mxu0 0
    %810 = vmatpush1.bf16.xpose.msra.mxu0 0
    %811 = vmatprep.subr.bf16.mxu0 0
    %812 = vmatpush1.bf16.xpose.msra.mxu0 0
    %813 = vmatprep.subr.bf16.mxu0 0
    %814 = vmatpush1.bf16.xpose.msra.mxu0 0
    %815 = vmatprep.subr.bf16.mxu0 0
    %816 = vmatpush1.bf16.xpose.msra.mxu0 0
    %817 = vmatprep.subr.bf16.mxu0 0
    %818 = vmatpush1.bf16.xpose.msra.mxu0 0
    %819 = vmatprep.mubr.bf16.mxu0 0
    %820 = vmatmul.mubr.bf16.gmra.mrb[0].mxu0 %v782
    %v821 = vpop.f32.mrb[0].mxu0
    %v822 = vadd.f32 0.0, %v821
    %v823 = vpop.f32.mrb[0].mxu0
    %v824 = vpop.f32.mrb[0].mxu0
    %v825 = vpop.f32.mrb[0].mxu0
    %826 = vdwg.mxu0
    %828 = vrot.lane.b32.xlu0 %v278, 96
    %v829 = vpop.permute.xlu0 %828
    %831 = vrot.lane.b32.xlu0 %v282, 96
    %v832 = vpop.permute.xlu0 %831
    %v834 = vsel %vm288, %v829, 0
    %v837 = vsel %vm288, %v832, 0
    %839 = vmatprep.subr.bf16.mxu0 0
    %840 = vmatpush1.bf16.xpose.msra.mxu0 %v837
    %841 = vmatprep.subr.bf16.mxu0 0
    %842 = vmatpush1.bf16.xpose.msra.mxu0 0
    %843 = vmatprep.subr.bf16.mxu0 0
    %844 = vmatpush1.bf16.xpose.msra.mxu0 0
    %845 = vmatprep.subr.bf16.mxu0 0
    %846 = vmatpush1.bf16.xpose.msra.mxu0 0
    %847 = vmatprep.subr.bf16.mxu0 0
    %848 = vmatpush1.bf16.xpose.msra.mxu0 0
    %849 = vmatprep.subr.bf16.mxu0 0
    %850 = vmatpush1.bf16.xpose.msra.mxu0 0
    %851 = vmatprep.subr.bf16.mxu0 0
    %852 = vmatpush1.bf16.xpose.msra.mxu0 0
    %853 = vmatprep.subr.bf16.mxu0 0
    %854 = vmatpush1.bf16.xpose.msra.mxu0 0
    %855 = vmatprep.subr.bf16.mxu0 0
    %856 = vmatpush1.bf16.xpose.msra.mxu0 0
    %857 = vmatprep.subr.bf16.mxu0 0
    %858 = vmatpush1.bf16.xpose.msra.mxu0 0
    %859 = vmatprep.subr.bf16.mxu0 0
    %860 = vmatpush1.bf16.xpose.msra.mxu0 0
    %861 = vmatprep.subr.bf16.mxu0 0
    %862 = vmatpush1.bf16.xpose.msra.mxu0 0
    %863 = vmatprep.subr.bf16.mxu0 0
    %864 = vmatpush1.bf16.xpose.msra.mxu0 0
    %865 = vmatprep.subr.bf16.mxu0 0
    %866 = vmatpush1.bf16.xpose.msra.mxu0 0
    %867 = vmatprep.subr.bf16.mxu0 0
    %868 = vmatpush1.bf16.xpose.msra.mxu0 0
    %869 = vmatprep.subr.bf16.mxu0 0
    %870 = vmatpush1.bf16.xpose.msra.mxu0 0
    %871 = vmatprep.mubr.bf16.mxu0 0
    %872 = vmatmul.mubr.bf16.gmra.mrb[0].mxu0 %v834
    %v873 = vpop.f32.mrb[0].mxu0
    %v874 = vadd.f32 0.0, %v873
    %v875 = vpop.f32.mrb[0].mxu0
    %v876 = vpop.f32.mrb[0].mxu0
    %v877 = vpop.f32.mrb[0].mxu0
    %878 = vdwg.mxu0
    %880 = vrot.lane.b32.xlu0 %v279, 96
    %v881 = vpop.permute.xlu0 %880
    %883 = vrot.lane.b32.xlu0 %v283, 96
    %v884 = vpop.permute.xlu0 %883
    %v886 = vsel %vm288, %v881, 0
    %v889 = vsel %vm288, %v884, 0
    %891 = vmatprep.subr.bf16.mxu0 0
    %892 = vmatpush1.bf16.xpose.msra.mxu0 %v889
    %893 = vmatprep.subr.bf16.mxu0 0
    %894 = vmatpush1.bf16.xpose.msra.mxu0 0
    %895 = vmatprep.subr.bf16.mxu0 0
    %896 = vmatpush1.bf16.xpose.msra.mxu0 0
    %897 = vmatprep.subr.bf16.mxu0 0
    %898 = vmatpush1.bf16.xpose.msra.mxu0 0
    %899 = vmatprep.subr.bf16.mxu0 0
    %900 = vmatpush1.bf16.xpose.msra.mxu0 0
    %901 = vmatprep.subr.bf16.mxu0 0
    %902 = vmatpush1.bf16.xpose.msra.mxu0 0
    %903 = vmatprep.subr.bf16.mxu0 0
    %904 = vmatpush1.bf16.xpose.msra.mxu0 0
    %905 = vmatprep.subr.bf16.mxu0 0
    %906 = vmatpush1.bf16.xpose.msra.mxu0 0
    %907 = vmatprep.subr.bf16.mxu0 0
    %908 = vmatpush1.bf16.xpose.msra.mxu0 0
    %909 = vmatprep.subr.bf16.mxu0 0
    %910 = vmatpush1.bf16.xpose.msra.mxu0 0
    %911 = vmatprep.subr.bf16.mxu0 0
    %912 = vmatpush1.bf16.xpose.msra.mxu0 0
    %913 = vmatprep.subr.bf16.mxu0 0
    %914 = vmatpush1.bf16.xpose.msra.mxu0 0
    %915 = vmatprep.subr.bf16.mxu0 0
    %916 = vmatpush1.bf16.xpose.msra.mxu0 0
    %917 = vmatprep.subr.bf16.mxu0 0
    %918 = vmatpush1.bf16.xpose.msra.mxu0 0
    %919 = vmatprep.subr.bf16.mxu0 0
    %920 = vmatpush1.bf16.xpose.msra.mxu0 0
    %921 = vmatprep.subr.bf16.mxu0 0
    %922 = vmatpush1.bf16.xpose.msra.mxu0 0
    %923 = vmatprep.mubr.bf16.mxu0 0
    %924 = vmatmul.mubr.bf16.gmra.mrb[0].mxu0 %v886
    %v925 = vpop.f32.mrb[0].mxu0
    %v926 = vadd.f32 0.0, %v925
    %v927 = vpop.f32.mrb[0].mxu0
    %v928 = vpop.f32.mrb[0].mxu0
    %v929 = vpop.f32.mrb[0].mxu0
    %930 = vdwg.mxu0
    %v931 = vsel %vm473, %v770, -inf
    %932 = vmax.xlane.f32.xlu0 %v931
    %v933 = vpop.xlane.xlu0 %932
    %v934 = vsel %vm473, %v822, -inf
    %935 = vmax.xlane.f32.xlu0 %v934
    %v936 = vpop.xlane.xlu0 %935
    %v937 = vsel %vm473, %v874, -inf
    %938 = vmax.xlane.f32.xlu0 %v937
    %v939 = vpop.xlane.xlu0 %938
    %v940 = vsel %vm473, %v926, -inf
    %941 = vmax.xlane.f32.xlu0 %v940
    %v942 = vpop.xlane.xlu0 %941
    %v943 = vsub.f32 %v770, %v933
    %v944 = vsub.f32 %v822, %v936
    %v945 = vsub.f32 %v874, %v939
    %v946 = vsub.f32 %v926, %v942
    %v947 = vmul.f32 %v943, 1.442695
    %v948 = vpow.pop %v947
    %v949 = vmul.f32 %v944, 1.442695
    %v950 = vpow.pop %v949
    %v951 = vmul.f32 %v945, 1.442695
    %v952 = vpow.pop %v951
    %v953 = vmul.f32 %v946, 1.442695
    %v954 = vpow.pop %v953
    %v955 = vsel %vm473, %v948, 0.0
    %956 = vadd.xlane.f32.xlu0 %v955
    %v957 = vpop.xlane.xlu0 %956
    %v958 = vsel %vm473, %v950, 0.0
    %959 = vadd.xlane.f32.xlu0 %v958
    %v960 = vpop.xlane.xlu0 %959
    %v961 = vsel %vm473, %v952, 0.0
    %962 = vadd.xlane.f32.xlu0 %v961
    %v963 = vpop.xlane.xlu0 %962
    %v964 = vsel %vm473, %v954, 0.0
    %965 = vadd.xlane.f32.xlu0 %v964
    %v966 = vpop.xlane.xlu0 %965
    %v967 = vrcp.pop %v957
    %v968 = vrcp.pop %v960
    %v969 = vrcp.pop %v963
    %v970 = vrcp.pop %v966
    %v971 = vmul.f32 %v948, %v967
    %v972 = vmul.f32 %v950, %v968
    %v973 = vmul.f32 %v952, %v969
    %v974 = vmul.f32 %v954, %v970
    %v975 = vadd.f32 %v971, 1.0
    %v976 = vadd.f32 %v972, 1.0
    %v977 = vadd.f32 %v973, 1.0
    %v978 = vadd.f32 %v974, 1.0
    %v979 = vpack.c.bf16 %v975, %v975
    %v980 = vpack.c.bf16 %v976, %v976
    %v981 = vpack.c.bf16 %v977, %v977
    %v982 = vpack.c.bf16 %v978, %v978
    %983 = vrot.lane.b32.xlu0 %v284, 32
    %v984 = vpop.permute.xlu0 %983
    %v986 = vsel %vm473, %v979, 0
    %v989 = vsel %vm532, %v984, 0
    %991 = vmatprep.subr.bf16.mxu0 0
    %992 = vmatpush1.bf16.msra.mxu0 %v989
    %993 = vmatprep.subr.bf16.mxu0 0
    %994 = vmatpush1.bf16.msra.mxu0 0
    %995 = vmatprep.subr.bf16.mxu0 0
    %996 = vmatpush1.bf16.msra.mxu0 0
    %997 = vmatprep.subr.bf16.mxu0 0
    %998 = vmatpush1.bf16.msra.mxu0 0
    %999 = vmatprep.subr.bf16.mxu0 0
    %1000 = vmatpush1.bf16.msra.mxu0 0
    %1001 = vmatprep.subr.bf16.mxu0 0
    %1002 = vmatpush1.bf16.msra.mxu0 0
    %1003 = vmatprep.subr.bf16.mxu0 0
    %1004 = vmatpush1.bf16.msra.mxu0 0
    %1005 = vmatprep.subr.bf16.mxu0 0
    %1006 = vmatpush1.bf16.msra.mxu0 0
    %1007 = vmatprep.subr.bf16.mxu0 0
    %1008 = vmatpush1.bf16.msra.mxu0 0
    %1009 = vmatprep.subr.bf16.mxu0 0
    %1010 = vmatpush1.bf16.msra.mxu0 0
    %1011 = vmatprep.subr.bf16.mxu0 0
    %1012 = vmatpush1.bf16.msra.mxu0 0
    %1013 = vmatprep.subr.bf16.mxu0 0
    %1014 = vmatpush1.bf16.msra.mxu0 0
    %1015 = vmatprep.subr.bf16.mxu0 0
    %1016 = vmatpush1.bf16.msra.mxu0 0
    %1017 = vmatprep.subr.bf16.mxu0 0
    %1018 = vmatpush1.bf16.msra.mxu0 0
    %1019 = vmatprep.subr.bf16.mxu0 0
    %1020 = vmatpush1.bf16.msra.mxu0 0
    %1021 = vmatprep.subr.bf16.mxu0 0
    %1022 = vmatpush1.bf16.msra.mxu0 0
    %1023 = vmatprep.mubr.bf16.mxu0 0
    %1024 = vmatmul.mubr.bf16.gmra.mrb[0].mxu0 %v986
    %v1025 = vpop.f32.mrb[0].mxu0
    %v1026 = vadd.f32 0.0, %v1025
    %v1027 = vpop.f32.mrb[0].mxu0
    %v1028 = vpop.f32.mrb[0].mxu0
    %v1029 = vpop.f32.mrb[0].mxu0
    %1030 = vdwg.mxu0
    %1031 = vrot.lane.b32.xlu0 %v285, 32
    %v1032 = vpop.permute.xlu0 %1031
    %v1034 = vsel %vm473, %v980, 0
    %v1037 = vsel %vm532, %v1032, 0
    %1039 = vmatprep.subr.bf16.mxu0 0
    %1040 = vmatpush1.bf16.msra.mxu0 %v1037
    %1041 = vmatprep.subr.bf16.mxu0 0
    %1042 = vmatpush1.bf16.msra.mxu0 0
    %1043 = vmatprep.subr.bf16.mxu0 0
    %1044 = vmatpush1.bf16.msra.mxu0 0
    %1045 = vmatprep.subr.bf16.mxu0 0
    %1046 = vmatpush1.bf16.msra.mxu0 0
    %1047 = vmatprep.subr.bf16.mxu0 0
    %1048 = vmatpush1.bf16.msra.mxu0 0
    %1049 = vmatprep.subr.bf16.mxu0 0
    %1050 = vmatpush1.bf16.msra.mxu0 0
    %1051 = vmatprep.subr.bf16.mxu0 0
    %1052 = vmatpush1.bf16.msra.mxu0 0
    %1053 = vmatprep.subr.bf16.mxu0 0
    %1054 = vmatpush1.bf16.msra.mxu0 0
    %1055 = vmatprep.subr.bf16.mxu0 0
    %1056 = vmatpush1.bf16.msra.mxu0 0
    %1057 = vmatprep.subr.bf16.mxu0 0
    %1058 = vmatpush1.bf16.msra.mxu0 0
    %1059 = vmatprep.subr.bf16.mxu0 0
    %1060 = vmatpush1.bf16.msra.mxu0 0
    %1061 = vmatprep.subr.bf16.mxu0 0
    %1062 = vmatpush1.bf16.msra.mxu0 0
    %1063 = vmatprep.subr.bf16.mxu0 0
    %1064 = vmatpush1.bf16.msra.mxu0 0
    %1065 = vmatprep.subr.bf16.mxu0 0
    %1066 = vmatpush1.bf16.msra.mxu0 0
    %1067 = vmatprep.subr.bf16.mxu0 0
    %1068 = vmatpush1.bf16.msra.mxu0 0
    %1069 = vmatprep.subr.bf16.mxu0 0
    %1070 = vmatpush1.bf16.msra.mxu0 0
    %1071 = vmatprep.mubr.bf16.mxu0 0
    %1072 = vmatmul.mubr.bf16.gmra.mrb[0].mxu0 %v1034
    %v1073 = vpop.f32.mrb[0].mxu0
    %v1074 = vadd.f32 0.0, %v1073
    %v1075 = vpop.f32.mrb[0].mxu0
    %v1076 = vpop.f32.mrb[0].mxu0
    %v1077 = vpop.f32.mrb[0].mxu0
    %1078 = vdwg.mxu0
    %1079 = vrot.lane.b32.xlu0 %v286, 32
    %v1080 = vpop.permute.xlu0 %1079
    %v1082 = vsel %vm473, %v981, 0
    %v1085 = vsel %vm532, %v1080, 0
    %1087 = vmatprep.subr.bf16.mxu0 0
    %1088 = vmatpush1.bf16.msra.mxu0 %v1085
    %1089 = vmatprep.subr.bf16.mxu0 0
    %1090 = vmatpush1.bf16.msra.mxu0 0
    %1091 = vmatprep.subr.bf16.mxu0 0
    %1092 = vmatpush1.bf16.msra.mxu0 0
    %1093 = vmatprep.subr.bf16.mxu0 0
    %1094 = vmatpush1.bf16.msra.mxu0 0
    %1095 = vmatprep.subr.bf16.mxu0 0
    %1096 = vmatpush1.bf16.msra.mxu0 0
    %1097 = vmatprep.subr.bf16.mxu0 0
    %1098 = vmatpush1.bf16.msra.mxu0 0
    %1099 = vmatprep.subr.bf16.mxu0 0
    %1100 = vmatpush1.bf16.msra.mxu0 0
    %1101 = vmatprep.subr.bf16.mxu0 0
    %1102 = vmatpush1.bf16.msra.mxu0 0
    %1103 = vmatprep.subr.bf16.mxu0 0
    %1104 = vmatpush1.bf16.msra.mxu0 0
    %1105 = vmatprep.subr.bf16.mxu0 0
    %1106 = vmatpush1.bf16.msra.mxu0 0
    %1107 = vmatprep.subr.bf16.mxu0 0
    %1108 = vmatpush1.bf16.msra.mxu0 0
    %1109 = vmatprep.subr.bf16.mxu0 0
    %1110 = vmatpush1.bf16.msra.mxu0 0
    %1111 = vmatprep.subr.bf16.mxu0 0
    %1112 = vmatpush1.bf16.msra.mxu0 0
    %1113 = vmatprep.subr.bf16.mxu0 0
    %1114 = vmatpush1.bf16.msra.mxu0 0
    %1115 = vmatprep.subr.bf16.mxu0 0
    %1116 = vmatpush1.bf16.msra.mxu0 0
    %1117 = vmatprep.subr.bf16.mxu0 0
    %1118 = vmatpush1.bf16.msra.mxu0 0
    %1119 = vmatprep.mubr.bf16.mxu0 0
    %1120 = vmatmul.mubr.bf16.gmra.mrb[0].mxu0 %v1082
    %v1121 = vpop.f32.mrb[0].mxu0
    %v1122 = vadd.f32 0.0, %v1121
    %v1123 = vpop.f32.mrb[0].mxu0
    %v1124 = vpop.f32.mrb[0].mxu0
    %v1125 = vpop.f32.mrb[0].mxu0
    %1126 = vdwg.mxu0
    %1127 = vrot.lane.b32.xlu0 %v287, 32
    %v1128 = vpop.permute.xlu0 %1127
    %v1130 = vsel %vm473, %v982, 0
    %v1133 = vsel %vm532, %v1128, 0
    %1135 = vmatprep.subr.bf16.mxu0 0
    %1136 = vmatpush1.bf16.msra.mxu0 %v1133
    %1137 = vmatprep.subr.bf16.mxu0 0
    %1138 = vmatpush1.bf16.msra.mxu0 0
    %1139 = vmatprep.subr.bf16.mxu0 0
    %1140 = vmatpush1.bf16.msra.mxu0 0
    %1141 = vmatprep.subr.bf16.mxu0 0
    %1142 = vmatpush1.bf16.msra.mxu0 0
    %1143 = vmatprep.subr.bf16.mxu0 0
    %1144 = vmatpush1.bf16.msra.mxu0 0
    %1145 = vmatprep.subr.bf16.mxu0 0
    %1146 = vmatpush1.bf16.msra.mxu0 0
    %1147 = vmatprep.subr.bf16.mxu0 0
    %1148 = vmatpush1.bf16.msra.mxu0 0
    %1149 = vmatprep.subr.bf16.mxu0 0
    %1150 = vmatpush1.bf16.msra.mxu0 0
    %1151 = vmatprep.subr.bf16.mxu0 0
    %1152 = vmatpush1.bf16.msra.mxu0 0
    %1153 = vmatprep.subr.bf16.mxu0 0
    %1154 = vmatpush1.bf16.msra.mxu0 0
    %1155 = vmatprep.subr.bf16.mxu0 0
    %1156 = vmatpush1.bf16.msra.mxu0 0
    %1157 = vmatprep.subr.bf16.mxu0 0
    %1158 = vmatpush1.bf16.msra.mxu0 0
    %1159 = vmatprep.subr.bf16.mxu0 0
    %1160 = vmatpush1.bf16.msra.mxu0 0
    %1161 = vmatprep.subr.bf16.mxu0 0
    %1162 = vmatpush1.bf16.msra.mxu0 0
    %1163 = vmatprep.subr.bf16.mxu0 0
    %1164 = vmatpush1.bf16.msra.mxu0 0
    %1165 = vmatprep.subr.bf16.mxu0 0
    %1166 = vmatpush1.bf16.msra.mxu0 0
    %1167 = vmatprep.mubr.bf16.mxu0 0
    %1168 = vmatmul.mubr.bf16.gmra.mrb[0].mxu0 %v1130
    %v1169 = vpop.f32.mrb[0].mxu0
    %v1170 = vadd.f32 0.0, %v1169
    %v1171 = vpop.f32.mrb[0].mxu0
    %v1172 = vpop.f32.mrb[0].mxu0
    %v1173 = vpop.f32.mrb[0].mxu0
    %1174 = vdwg.mxu0
    %1179 = vrot.lane.b32.xlu0 %v1026, 32
    %v1180 = vpop.permute.xlu0 %1179
    %1181 = vrot.lane.b32.xlu0 %v1074, 32
    %v1182 = vpop.permute.xlu0 %1181
    %1183 = vrot.lane.b32.xlu0 %v1122, 32
    %v1184 = vpop.permute.xlu0 %1183
    %1185 = vrot.lane.b32.xlu0 %v1170, 32
    %v1186 = vpop.permute.xlu0 %1185
    %v1191 = vsel %vm288, %v571, %v1180
    %v1192 = vsel %vm288, %v620, %v1182
    %v1193 = vsel %vm288, %v669, %v1184
    %v1194 = vsel %vm288, %v718, %v1186
    %1199 = vrot.lane.b32.xlu0 %v184, 64
    %v1200 = vpop.permute.xlu0 %1199
    %1201 = vrot.lane.b32.xlu0 %v188, 64
    %v1202 = vpop.permute.xlu0 %1201
    %1203 = vrot.lane.b32.xlu0 %v194, 64
    %v1204 = vpop.permute.xlu0 %1203
    %1205 = vrot.lane.b32.xlu0 %v198, 64
    %v1206 = vpop.permute.xlu0 %1205
    %v1211 = vadd.f32 %v1191, %v1200
    %v1212 = vadd.f32 %v1192, %v1202
    %v1213 = vadd.f32 %v1193, %v1204
    %v1214 = vadd.f32 %v1194, %v1206
    %v1215 = vmax.f32 %v1211, 0.0
    %v1216 = vmax.f32 %v1212, 0.0
    %v1217 = vmax.f32 %v1213, 0.0
    %v1218 = vmax.f32 %v1214, 0.0
    %1219 = vst.msk [vmem:[#allocation7] sm:$0xff] %vm202, %v1215
    %1220 = vst.msk [vmem:[#allocation7 + $0x8] sm:$0xff] %vm202, %v1216
    %1221 = vst.msk [vmem:[#allocation7 + $0x10] sm:$0xff] %vm202, %v1217
    %1222 = vst.msk [vmem:[#allocation7 + $0x18] sm:$0xff] %vm202, %v1218
    // Predicated region
    $region22: #{tpu_custom_call.1} parent=1 // pred_check
      _
    $region23: #{tpu_custom_call.1} parent=1 // pred_check_branch
      %1224 = sbr.rel (0) target = $region25
    $region24: #{tpu_custom_call.1} parent=1 // pred_region
      %s1226 = ssub.s32 512, 512
      %1227 = vsyncadd [#allocation4], %s1226
      %s1228 = sshll.u32 [#allocation7], 4
      %s1229 = int_to_ptr.vmem [resolvable:$true] %s1228
      %1234 = dma.vmem_to_hbm [thread:$0]  %s1229, 512, %s3, [#allocation4], 128, 128, 8
    $region25: #{tpu_custom_call.1} parent=1 // pred_fallthru
      _
    // Predicated region
    $region26: #{tpu_custom_call.1} parent=1 // pred_check
      _
    $region27: #{tpu_custom_call.1} parent=1 // pred_check_branch
      %1236 = sbr.rel (0) target = $region29
    $region28: #{tpu_custom_call.1} parent=1 // pred_region
      %1237 = dma.done [#allocation4], 512
    $region29: #{tpu_custom_call.1} parent=1 // pred_fallthru
      _
    %1238 = vsyncpa [#allocation3], 1
    %1239 = vsyncpa [#allocation6], 1
    %1240 = vsyncpa [#allocation4], 1

</llo_original>
